<compile_context>
chip_gen: v7x
topology: tpu7x:2x2x1
jax: 0.10.0
libtpu: 0.0.40
codegen_flags: <defaults>
</compile_context>

<pallas_src>
import functools

import jax
import jax.numpy as jnp
from jax.experimental import pallas as pl
from jax.experimental.pallas import tpu as pltpu

_BN_EPS = 1e-5
_LEAKY_SLOPE = 0.01


def _softplus(t):
    # torch softplus: log(1 + exp(t)) (threshold branch is numerically identical here)
    return jnp.logaddexp(t, 0.0)


def mlp_for_two_kernel(x_ref, w1s_ref, shift_ref, w2_ref, b2_ref, out_ref, *, out_half):
    # BN scale already folded into w1s; BN shift (beta - mean*s) is `shift`.
    hn = jnp.dot(x_ref[...], w1s_ref[...],
                 preferred_element_type=jnp.float32) + shift_ref[...]
    ha = jnp.where(hn >= 0, hn, _LEAKY_SLOPE * hn)              # LeakyReLU(0.01)

    out = jnp.dot(ha, w2_ref[...],
                  preferred_element_type=jnp.float32) + b2_ref[...]

    # Double softplus on the upper (scale) lane half; one wide store.
    sp = _softplus(_softplus(out))
    lane = jax.lax.broadcasted_iota(jnp.int32, out.shape, 1)
    out_ref[...] = jnp.where(lane >= out_half, sp, out)


@functools.partial(jax.jit, static_argnames=("output_size", "batch_tile"))
def mlp_for_two(x, w1, gamma, beta, w2, b2, *, output_size, batch_tile=8192):
    """Forward pass of MLPForTwo (training-mode BatchNorm). Returns (loc, scale).

    x: (B, D) f32; w1: (D, H); gamma/beta: (H,); w2: (H, 2*O); b2: (2*O,).
    b1 is not needed (cancelled by training-mode BatchNorm).
    """
    B, D = x.shape
    H = w1.shape[1]
    O2 = w2.shape[1]
    assert O2 == 2 * output_size

    x = x.astype(jnp.float32)
    w1 = w1.astype(jnp.float32)
    w2 = w2.astype(jnp.float32)

    # ---- Batch statistics in XLA (wrapper side), centered Gram formulation ----
    xm = jnp.mean(x, axis=0, keepdims=True)                     # (1, D)
    mean = xm @ w1                                              # (1, H) mean of h (b1 cancels)
    xc = x - xm                                                 # (B, D)
    gram_c = xc.T @ xc                                          # (D, D) centered Gram
    var = jnp.sum((gram_c @ w1) * w1, axis=0, keepdims=True) / B  # (1, H) biased batch var

    s = gamma.reshape(1, H) * jax.lax.rsqrt(var + _BN_EPS)      # gamma folded into scale
    w1s = w1 * s                                                # fold BN scale into W1
    shift = beta.reshape(1, H) - mean * s                       # fold BN shift (+beta)
    b2_r = b2.reshape(1, O2)

    # ---- Batch tiling: big tiles, pad-and-slice for ragged batches ----
    batch_tile = max(8, ((batch_tile + 7) // 8) * 8)            # sublane-aligned tile
    if B <= batch_tile:
        TB = B                                                  # single full-extent tile
        nb = 1
        x_pad = x
    else:
        TB = batch_tile
        nb = pl.cdiv(B, TB)
        b_pad = nb * TB
        x_pad = x if b_pad == B else jnp.pad(x, ((0, b_pad - B), (0, 0)))
    B_pad = nb * TB

    kernel = functools.partial(mlp_for_two_kernel, out_half=output_size)

    out = pl.pallas_call(
        kernel,
        out_shape=jax.ShapeDtypeStruct((B_pad, O2), jnp.float32),
        grid_spec=pltpu.PrefetchScalarGridSpec(
            num_scalar_prefetch=0,
            grid=(nb,),                                          # single pass over batch tiles
            in_specs=[
                pl.BlockSpec((TB, D), lambda i: (i, 0)),         # x: pipelined per tile
                pl.BlockSpec((D, H), lambda i: (0, 0)),          # W1 * s: resident
                pl.BlockSpec((1, H), lambda i: (0, 0)),          # shift = beta - mean*s
                pl.BlockSpec((H, O2), lambda i: (0, 0)),         # W2: resident
                pl.BlockSpec((1, O2), lambda i: (0, 0)),         # b2
            ],
            out_specs=pl.BlockSpec((TB, O2), lambda i: (i, 0)),
        ),
        compiler_params=pltpu.CompilerParams(
            dimension_semantics=("parallel",),                   # batch-parallel -> both v7x TCs
            vmem_limit_bytes=32 * 1024 * 1024,                   # safe on v5e/v6e/v7x
        ),
    )(x_pad, w1s, shift, w2, b2_r)

    out = out[:B]                                                # drop pad rows (HBM slice)
    # split_in_half in the wrapper: an HBM slice is free.
    return out[:, :output_size], out[:, output_size:]


def _torch_linear_init(key, fan_in, fan_out):
    """Deterministic PyTorch-Linear-like init: U(-1/sqrt(fan_in), 1/sqrt(fan_in))."""
    kw, kb = jax.random.split(key)
    bound = 1.0 / jnp.sqrt(jnp.float32(fan_in))
    w = jax.random.uniform(kw, (fan_in, fan_out), jnp.float32, -bound, bound)
    b = jax.random.uniform(kb, (fan_out,), jnp.float32, -bound, bound)
    return w, b


def reference_forward(x, w1, b1, gamma, beta, w2, b2, output_size):
    """Pure-JAX reference of the PyTorch module (b1 included; BN cancels it)."""
    h = x @ w1 + b1
    mean = h.mean(0, keepdims=True)
    var = ((h - mean) ** 2).mean(0, keepdims=True)               # biased batch variance
    hn = (h - mean) / jnp.sqrt(var + _BN_EPS) * gamma + beta
    ha = jnp.where(hn >= 0, hn, _LEAKY_SLOPE * hn)
    out = ha @ w2 + b2
    loc = out[:, :output_size]
    scale = _softplus(_softplus(out[:, output_size:]))
    return loc, scale


if __name__ == "__main__":
    # MLPForTwo(input_size=16, output_size=8, hidden_layers=[32],
    #           last_activation=(None, nn.Softplus)), batch=8.
    B, D, H, O = 8, 16, 32, 8

    key = jax.random.PRNGKey(0)
    kx, k1, k2, kg, kb, kx2 = jax.random.split(key, 6)

    x = jax.random.normal(kx, (B, D), jnp.float32)

    w1, b1 = _torch_linear_init(k1, D, H)               # input_layer
    w2, b2 = _torch_linear_init(k2, H, 2 * O)           # output_layer (2*output_size)
    gamma = 1.0 + 0.1 * jax.random.normal(kg, (H,), jnp.float32)
    beta = 0.1 * jax.random.normal(kb, (H,), jnp.float32)

    loc, scale = mlp_for_two(x, w1, gamma, beta, w2, b2, output_size=O)
    jax.block_until_ready((loc, scale))

    ref_loc, ref_scale = reference_forward(x, w1, b1, gamma, beta, w2, b2, O)
    assert loc.shape == (B, O) and scale.shape == (B, O)
    assert jnp.allclose(loc, ref_loc, atol=1e-4, rtol=1e-4)
    assert jnp.allclose(scale, ref_scale, atol=1e-4, rtol=1e-4)
    assert bool(jnp.all(scale > 0))                      # softplus output is positive

    # Multi-tile + ragged-batch path: B2=50 with batch_tile=16 -> pad to 64, 4 tiles,
    # batch-parallel grid, pad rows sliced off.
    B2 = 50
    x2 = jax.random.normal(kx2, (B2, D), jnp.float32)
    loc2, scale2 = mlp_for_two(x2, w1, gamma, beta, w2, b2,
                               output_size=O, batch_tile=16)
    jax.block_until_ready((loc2, scale2))
    ref_loc2, ref_scale2 = reference_forward(x2, w1, b1, gamma, beta, w2, b2, O)
    assert loc2.shape == (B2, O) and scale2.shape == (B2, O)
    assert jnp.allclose(loc2, ref_loc2, atol=1e-4, rtol=1e-4)
    assert jnp.allclose(scale2, ref_scale2, atol=1e-4, rtol=1e-4)

    print("KERNEL_OK")
</pallas_src>

<mosaic_0001>
module attributes {stable_mosaic.version = 11 : i64} {
  func.func @mlp_for_two_kernel(%arg0: i32, %arg1: memref<8x16xf32, #tpu.memory_space<vmem>>, %arg2: memref<16x32xf32, #tpu.memory_space<vmem>>, %arg3: memref<1x32xf32, #tpu.memory_space<vmem>>, %arg4: memref<32x16xf32, #tpu.memory_space<vmem>>, %arg5: memref<1x16xf32, #tpu.memory_space<vmem>>, %arg6: memref<8x16xf32, #tpu.memory_space<vmem>>) attributes {dimension_semantics = [#tpu.dimension_semantics<parallel>], iteration_bounds = array<i64: 1>, scalar_prefetch = 0 : i64, scratch_operands = 0 : i64, tpu.core_type = #tpu.core_type<tc>, window_params = [{transform_indices = @transform_0, window_bounds = array<i64: 8, 16>}, {pipeline_mode = #tpu.pipeline_mode<synchronous>, transform_indices = @transform_1, window_bounds = array<i64: 16, 32>}, {pipeline_mode = #tpu.pipeline_mode<synchronous>, transform_indices = @transform_2, window_bounds = array<i64: 1, 32>}, {pipeline_mode = #tpu.pipeline_mode<synchronous>, transform_indices = @transform_3, window_bounds = array<i64: 32, 16>}, {pipeline_mode = #tpu.pipeline_mode<synchronous>, transform_indices = @transform_4, window_bounds = array<i64: 1, 16>}, {transform_indices = @transform_5, window_bounds = array<i64: 8, 16>}]} {
    %c0 = arith.constant 0 : index
    %c0_0 = arith.constant 0 : index
    %0 = vector.load %arg1[%c0, %c0_0] : memref<8x16xf32, #tpu.memory_space<vmem>>, vector<8x16xf32>
    %c0_1 = arith.constant 0 : index
    %c0_2 = arith.constant 0 : index
    %1 = vector.load %arg2[%c0_1, %c0_2] : memref<16x32xf32, #tpu.memory_space<vmem>>, vector<16x32xf32>
    %cst = arith.constant dense<0.000000e+00> : vector<8x32xf32>
    %2 = tpu.matmul %0, %1, %cst {dimension_numbers = #tpu.dot_dimension_numbers<[1], [0], [0], [1], [0, 0, 1, 1], [], []>} : vector<8x16xf32>, vector<16x32xf32>, vector<8x32xf32> -> vector<8x32xf32>
    %c0_3 = arith.constant 0 : index
    %c0_4 = arith.constant 0 : index
    %3 = vector.load %arg3[%c0_3, %c0_4] : memref<1x32xf32, #tpu.memory_space<vmem>>, vector<1x32xf32>
    %4 = vector.broadcast %3 : vector<1x32xf32> to vector<8x32xf32>
    %5 = arith.addf %2, %4 : vector<8x32xf32>
    %cst_5 = arith.constant 0.000000e+00 : f32
    %6 = vector.broadcast %cst_5 : f32 to vector<8x32xf32>
    %7 = arith.cmpf oge, %5, %6 : vector<8x32xf32>
    %cst_6 = arith.constant 0.00999999977 : f32
    %8 = vector.broadcast %cst_6 : f32 to vector<8x32xf32>
    %9 = arith.mulf %8, %5 : vector<8x32xf32>
    %10 = arith.select %7, %5, %9 : vector<8x32xi1>, vector<8x32xf32>
    %c0_7 = arith.constant 0 : index
    %c0_8 = arith.constant 0 : index
    %11 = vector.load %arg4[%c0_7, %c0_8] : memref<32x16xf32, #tpu.memory_space<vmem>>, vector<32x16xf32>
    %cst_9 = arith.constant dense<0.000000e+00> : vector<8x16xf32>
    %12 = tpu.matmul %10, %11, %cst_9 {dimension_numbers = #tpu.dot_dimension_numbers<[1], [0], [0], [1], [0, 0, 1, 1], [], []>} : vector<8x32xf32>, vector<32x16xf32>, vector<8x16xf32> -> vector<8x16xf32>
    %c0_10 = arith.constant 0 : index
    %c0_11 = arith.constant 0 : index
    %13 = vector.load %arg5[%c0_10, %c0_11] : memref<1x16xf32, #tpu.memory_space<vmem>>, vector<1x16xf32>
    %14 = vector.broadcast %13 : vector<1x16xf32> to vector<8x16xf32>
    %15 = arith.addf %12, %14 : vector<8x16xf32>
    %cst_12 = arith.constant 0.000000e+00 : f32
    %16 = vector.broadcast %cst_12 : f32 to vector<8x16xf32>
    %17 = arith.maximumf %15, %16 : vector<8x16xf32>
    %18 = vector.broadcast %cst_12 : f32 to vector<8x16xf32>
    %19 = arith.subf %15, %18 : vector<8x16xf32>
    %20 = arith.cmpf one, %19, %19 : vector<8x16xf32>
    %21 = vector.broadcast %cst_12 : f32 to vector<8x16xf32>
    %22 = arith.addf %15, %21 : vector<8x16xf32>
    %23 = math.absf %19 : vector<8x16xf32>
    %cst_13 = arith.constant 0.000000e+00 : f32
    %24 = vector.broadcast %cst_13 : f32 to vector<8x16xf32>
    %25 = arith.subf %24, %23 : vector<8x16xf32>
    %26 = math.exp %25 : vector<8x16xf32>
    %27 = math.log1p %26 : vector<8x16xf32>
    %28 = arith.addf %17, %27 : vector<8x16xf32>
    %29 = arith.select %20, %22, %28 : vector<8x16xi1>, vector<8x16xf32>
    %cst_14 = arith.constant 0.000000e+00 : f32
    %30 = vector.broadcast %cst_14 : f32 to vector<8x16xf32>
    %31 = arith.maximumf %29, %30 : vector<8x16xf32>
    %32 = vector.broadcast %cst_14 : f32 to vector<8x16xf32>
    %33 = arith.subf %29, %32 : vector<8x16xf32>
    %34 = arith.cmpf one, %33, %33 : vector<8x16xf32>
    %35 = vector.broadcast %cst_14 : f32 to vector<8x16xf32>
    %36 = arith.addf %29, %35 : vector<8x16xf32>
    %37 = math.absf %33 : vector<8x16xf32>
    %cst_15 = arith.constant 0.000000e+00 : f32
    %38 = vector.broadcast %cst_15 : f32 to vector<8x16xf32>
    %39 = arith.subf %38, %37 : vector<8x16xf32>
    %40 = math.exp %39 : vector<8x16xf32>
    %41 = math.log1p %40 : vector<8x16xf32>
    %42 = arith.addf %31, %41 : vector<8x16xf32>
    %43 = arith.select %34, %36, %42 : vector<8x16xi1>, vector<8x16xf32>
    %44 = tpu.iota {dimensions = array<i32: 1>} : vector<8x16xi32>
    %c8_i32 = arith.constant 8 : i32
    %45 = vector.broadcast %c8_i32 : i32 to vector<8x16xi32>
    %46 = arith.cmpi sge, %44, %45 : vector<8x16xi32>
    %47 = arith.select %46, %43, %15 : vector<8x16xi1>, vector<8x16xf32>
    %c0_16 = arith.constant 0 : index
    %c0_17 = arith.constant 0 : index
    %48 = vector.load %arg6[%c0_16, %c0_17] : memref<8x16xf32, #tpu.memory_space<vmem>>, vector<8x16xf32>
    tpu.vector_store %arg6[%c0_16, %c0_17], %47 {strides = array<i32>} : memref<8x16xf32, #tpu.memory_space<vmem>>, vector<8x16xf32>,
    return
  }
  func.func @transform_0(%arg0: i32) -> (i32, i32) {
    %c0_i32 = arith.constant 0 : i32
    %c0_i32_0 = arith.constant 0 : i32
    return %arg0, %c0_i32 : i32, i32
  }
  func.func @transform_1(%arg0: i32) -> (i32, i32) {
    %c0_i32 = arith.constant 0 : i32
    %c0_i32_0 = arith.constant 0 : i32
    %c0_i32_1 = arith.constant 0 : i32
    return %c0_i32, %c0_i32_0 : i32, i32
  }
  func.func @transform_2(%arg0: i32) -> (i32, i32) {
    %c0_i32 = arith.constant 0 : i32
    %c0_i32_0 = arith.constant 0 : i32
    %c0_i32_1 = arith.constant 0 : i32
    return %c0_i32, %c0_i32_0 : i32, i32
  }
  func.func @transform_3(%arg0: i32) -> (i32, i32) {
    %c0_i32 = arith.constant 0 : i32
    %c0_i32_0 = arith.constant 0 : i32
    %c0_i32_1 = arith.constant 0 : i32
    return %c0_i32, %c0_i32_0 : i32, i32
  }
  func.func @transform_4(%arg0: i32) -> (i32, i32) {
    %c0_i32 = arith.constant 0 : i32
    %c0_i32_0 = arith.constant 0 : i32
    %c0_i32_1 = arith.constant 0 : i32
    return %c0_i32, %c0_i32_0 : i32, i32
  }
  func.func @transform_5(%arg0: i32) -> (i32, i32) {
    %c0_i32 = arith.constant 0 : i32
    %c0_i32_0 = arith.constant 0 : i32
    return %arg0, %c0_i32 : i32, i32
  }
}

</mosaic_0001>

<llo_original>
// kernel: mlp_for_two.1
$region0: #{mlp_for_two.1}
  #allocation0 [shape = 'u32[]', space=smem, size = 0x4, offset = 0x4, fixed_abs, tag = 'smem constant byte address 0x4 - core index']
  #allocation1 [shape = 'u32[144,128]{1,0:T(1,128)}', space=vmem, size = 0x12000, scoped, tag = 'internal scratch']
  %s0 = inlined_call_operand.vmem [shape: f32[8,16], index: 0, kind: input, shape index: {}]
  %s1 = inlined_call_operand.vmem [shape: f32[16,32], index: 1, kind: input, shape index: {}]
  %s2 = inlined_call_operand.vmem [shape: f32[1,32], index: 2, kind: input, shape index: {}]
  %s3 = inlined_call_operand.vmem [shape: f32[32,16], index: 3, kind: input, shape index: {}]
  %s4 = inlined_call_operand.vmem [shape: f32[1,16], index: 4, kind: input, shape index: {}]
  %s5 = inlined_call_operand.vmem [shape: f32[8,16], index: 5, kind: output, shape index: {}]
  %s6 = sld [smem:[#allocation0]]
  $region30: #{mlp_for_two.1} parent=0
    _
  %s8 = ssub.s32 1, %s6
  %s9 = scalar_select 0, %s8, %s6
  // Predicated region
  $region2: #{mlp_for_two.1} parent=0 // pred_check
    _
  $region3: #{mlp_for_two.1} parent=0 // pred_check_branch
    %11 = sbr.rel (0) target = $region5
  $region4: #{mlp_for_two.1} parent=0 // pred_region
    _
  $region5: #{mlp_for_two.1} parent=0 // pred_fallthru
    _
  // Predicated region
  $region6: #{mlp_for_two.1} parent=0 // pred_check
    _
  $region7: #{mlp_for_two.1} parent=0 // pred_check_branch
    %13 = sbr.rel (0) target = $region9
  $region8: #{mlp_for_two.1} parent=0 // pred_region
    _
  $region9: #{mlp_for_two.1} parent=0 // pred_fallthru
    _
  // Predicated region
  $region10: #{mlp_for_two.1} parent=0 // pred_check
    _
  $region11: #{mlp_for_two.1} parent=0 // pred_check_branch
    %15 = sbr.rel (0) target = $region13
  $region12: #{mlp_for_two.1} parent=0 // pred_region
    _
  $region13: #{mlp_for_two.1} parent=0 // pred_fallthru
    _
  // Predicated region
  $region14: #{mlp_for_two.1} parent=0 // pred_check
    _
  $region15: #{mlp_for_two.1} parent=0 // pred_check_branch
    %17 = sbr.rel (0) target = $region17
  $region16: #{mlp_for_two.1} parent=0 // pred_region
    _
  $region17: #{mlp_for_two.1} parent=0 // pred_fallthru
    _
  // Predicated region
  $region18: #{mlp_for_two.1} parent=0 // pred_check
    _
  $region19: #{mlp_for_two.1} parent=0 // pred_check_branch
    %19 = sbr.rel (0) target = $region21
  $region20: #{mlp_for_two.1} parent=0 // pred_region
    _
  $region21: #{mlp_for_two.1} parent=0 // pred_fallthru
    _
  %v20 = vld [vmem:[%s0] sm:$0xff]
  %v21 = vld [vmem:[%s1] sm:$0xff]
  %v22 = vld [vmem:[%s1 + $0x8] sm:$0xff]
  %v23 = vld [vmem:[%s2] sm:$0x1]
  %v25 = vlaneseq
  %v26 = vshrl.u32 %v25, 7
  %v27 = vsub.s32 0, %v26
  %v28 = vrot.slane %v23, %v27
  %vm30 = vcmask 130048
  %v32 = vsel %vm30, %v20, 0
  %34 = vmatprep.subr.mxu0 0.0
  %35 = vmatpush1.msra.mxu0 %v21
  %36 = vmatprep.subr.mxu0 0.0
  %37 = vmatpush1.msra.mxu0 %v22
  %38 = vmatprep.subr.mxu0 0.0
  %39 = vmatpush1.msra.mxu0 0.0
  %40 = vmatprep.subr.mxu0 0.0
  %41 = vmatpush1.msra.mxu0 0.0
  %42 = vmatprep.subr.mxu0 0.0
  %43 = vmatpush1.msra.mxu0 0.0
  %44 = vmatprep.subr.mxu0 0.0
  %45 = vmatpush1.msra.mxu0 0.0
  %46 = vmatprep.subr.mxu0 0.0
  %47 = vmatpush1.msra.mxu0 0.0
  %48 = vmatprep.subr.mxu0 0.0
  %49 = vmatpush1.msra.mxu0 0.0
  %50 = vmatprep.subr.mxu0 0.0
  %51 = vmatpush1.msra.mxu0 0.0
  %52 = vmatprep.subr.mxu0 0.0
  %53 = vmatpush1.msra.mxu0 0.0
  %54 = vmatprep.subr.mxu0 0.0
  %55 = vmatpush1.msra.mxu0 0.0
  %56 = vmatprep.subr.mxu0 0.0
  %57 = vmatpush1.msra.mxu0 0.0
  %58 = vmatprep.subr.mxu0 0.0
  %59 = vmatpush1.msra.mxu0 0.0
  %60 = vmatprep.subr.mxu0 0.0
  %61 = vmatpush1.msra.mxu0 0.0
  %62 = vmatprep.subr.mxu0 0.0
  %63 = vmatpush1.msra.mxu0 0.0
  %64 = vmatprep.subr.mxu0 0.0
  %65 = vmatpush1.msra.mxu0 0.0
  %66 = vmatprep.subr.mxu0 0.0
  %67 = vmatpush1.msra.mxu0 0.0
  %68 = vmatprep.subr.mxu0 0.0
  %69 = vmatpush1.msra.mxu0 0.0
  %70 = vmatprep.subr.mxu0 0.0
  %71 = vmatpush1.msra.mxu0 0.0
  %72 = vmatprep.subr.mxu0 0.0
  %73 = vmatpush1.msra.mxu0 0.0
  %74 = vmatprep.subr.mxu0 0.0
  %75 = vmatpush1.msra.mxu0 0.0
  %76 = vmatprep.subr.mxu0 0.0
  %77 = vmatpush1.msra.mxu0 0.0
  %78 = vmatprep.subr.mxu0 0.0
  %79 = vmatpush1.msra.mxu0 0.0
  %80 = vmatprep.subr.mxu0 0.0
  %81 = vmatpush1.msra.mxu0 0.0
  %82 = vmatprep.subr.mxu0 0.0
  %83 = vmatpush1.msra.mxu0 0.0
  %84 = vmatprep.subr.mxu0 0.0
  %85 = vmatpush1.msra.mxu0 0.0
  %86 = vmatprep.subr.mxu0 0.0
  %87 = vmatpush1.msra.mxu0 0.0
  %88 = vmatprep.subr.mxu0 0.0
  %89 = vmatpush1.msra.mxu0 0.0
  %90 = vmatprep.subr.mxu0 0.0
  %91 = vmatpush1.msra.mxu0 0.0
  %92 = vmatprep.subr.mxu0 0.0
  %93 = vmatpush1.msra.mxu0 0.0
  %94 = vmatprep.subr.mxu0 0.0
  %95 = vmatpush1.msra.mxu0 0.0
  %96 = vmatprep.subr.mxu0 0.0
  %97 = vmatpush1.msra.mxu0 0.0
  %98 = vmatprep.mubr.f32.mxu0 0.0
  %99 = vmatmul.mubr.f32.gmra.mrb[0].mxu0 %v32
  %v100 = vpop.f32.mrb[0].mxu0
  %v101 = vadd.f32 %v28, %v100
  %v102 = vpop.f32.mrb[0].mxu0
  %103 = vdwg.mxu0
  %vm104 = vcmp.ge.f32.partialorder %v101, 0.0
  %v105 = vmul.f32 %v101, 0.01
  %v106 = vsel %vm104, %v101, %v105
  %v107 = vld [vmem:[%s3] sm:$0xff]
  %v108 = vld [vmem:[%s3 + $0x8] sm:$0xff]
  %v109 = vld [vmem:[%s3 + $0x10] sm:$0xff]
  %v110 = vld [vmem:[%s3 + $0x18] sm:$0xff]
  %v111 = vld [vmem:[%s4] sm:$0x1]
  %v113 = vlaneseq
  %v114 = vshrl.u32 %v113, 7
  %v115 = vsub.s32 0, %v114
  %v116 = vrot.slane %v111, %v115
  %vm118 = vcmask 261120
  %v120 = vsel %vm118, %v106, 0
  %122 = vmatprep.subr.mxu0 0.0
  %123 = vmatpush1.msra.mxu0 %v107
  %124 = vmatprep.subr.mxu0 0.0
  %125 = vmatpush1.msra.mxu0 %v108
  %126 = vmatprep.subr.mxu0 0.0
  %127 = vmatpush1.msra.mxu0 %v109
  %128 = vmatprep.subr.mxu0 0.0
  %129 = vmatpush1.msra.mxu0 %v110
  %130 = vmatprep.subr.mxu0 0.0
  %131 = vmatpush1.msra.mxu0 0.0
  %132 = vmatprep.subr.mxu0 0.0
  %133 = vmatpush1.msra.mxu0 0.0
  %134 = vmatprep.subr.mxu0 0.0
  %135 = vmatpush1.msra.mxu0 0.0
  %136 = vmatprep.subr.mxu0 0.0
  %137 = vmatpush1.msra.mxu0 0.0
  %138 = vmatprep.subr.mxu0 0.0
  %139 = vmatpush1.msra.mxu0 0.0
  %140 = vmatprep.subr.mxu0 0.0
  %141 = vmatpush1.msra.mxu0 0.0
  %142 = vmatprep.subr.mxu0 0.0
  %143 = vmatpush1.msra.mxu0 0.0
  %144 = vmatprep.subr.mxu0 0.0
  %145 = vmatpush1.msra.mxu0 0.0
  %146 = vmatprep.subr.mxu0 0.0
  %147 = vmatpush1.msra.mxu0 0.0
  %148 = vmatprep.subr.mxu0 0.0
  %149 = vmatpush1.msra.mxu0 0.0
  %150 = vmatprep.subr.mxu0 0.0
  %151 = vmatpush1.msra.mxu0 0.0
  %152 = vmatprep.subr.mxu0 0.0
  %153 = vmatpush1.msra.mxu0 0.0
  %154 = vmatprep.subr.mxu0 0.0
  %155 = vmatpush1.msra.mxu0 0.0
  %156 = vmatprep.subr.mxu0 0.0
  %157 = vmatpush1.msra.mxu0 0.0
  %158 = vmatprep.subr.mxu0 0.0
  %159 = vmatpush1.msra.mxu0 0.0
  %160 = vmatprep.subr.mxu0 0.0
  %161 = vmatpush1.msra.mxu0 0.0
  %162 = vmatprep.subr.mxu0 0.0
  %163 = vmatpush1.msra.mxu0 0.0
  %164 = vmatprep.subr.mxu0 0.0
  %165 = vmatpush1.msra.mxu0 0.0
  %166 = vmatprep.subr.mxu0 0.0
  %167 = vmatpush1.msra.mxu0 0.0
  %168 = vmatprep.subr.mxu0 0.0
  %169 = vmatpush1.msra.mxu0 0.0
  %170 = vmatprep.subr.mxu0 0.0
  %171 = vmatpush1.msra.mxu0 0.0
  %172 = vmatprep.subr.mxu0 0.0
  %173 = vmatpush1.msra.mxu0 0.0
  %174 = vmatprep.subr.mxu0 0.0
  %175 = vmatpush1.msra.mxu0 0.0
  %176 = vmatprep.subr.mxu0 0.0
  %177 = vmatpush1.msra.mxu0 0.0
  %178 = vmatprep.subr.mxu0 0.0
  %179 = vmatpush1.msra.mxu0 0.0
  %180 = vmatprep.subr.mxu0 0.0
  %181 = vmatpush1.msra.mxu0 0.0
  %182 = vmatprep.subr.mxu0 0.0
  %183 = vmatpush1.msra.mxu0 0.0
  %184 = vmatprep.subr.mxu0 0.0
  %185 = vmatpush1.msra.mxu0 0.0
  %186 = vmatprep.mubr.f32.mxu0 0.0
  %187 = vmatmul.mubr.f32.gmra.mrb[0].mxu0 %v120
  %v188 = vpop.f32.mrb[0].mxu0
  %v189 = vadd.f32 %v116, %v188
  %v190 = vpop.f32.mrb[0].mxu0
  %191 = vdwg.mxu0
  %v192 = vmax.f32 %v189, 0.0
  %vm193 = vcmp.ne.f32.partialorder %v189, %v189
  %v194 = vadd.f32 %v189, 0.0
  %v195 = vand.u32 2147483647, %v189
  %v196 = vsub.f32 0.0, %v195
  %v197 = vmul.f32 %v196, 1.442695
  %v198 = vpow.pop %v197
  %v199 = vadd.f32 %v198, 1.0
  %v200 = vlog2.pop %v199
  %v201 = vmul.f32 %v200, 0.6931472
  %v202 = vmul.f32 -0.5, %v198
  %v203 = vadd.f32 %v202, 1.0
  %v204 = vmul.f32 %v203, %v198
  %v205 = vand.u32 2147483647, %v198
  %vm206 = vcmp.lt.f32.partialorder %v205, 0.0004427343
  %v207 = vsel %vm206, %v204, %v201
  %v208 = vadd.f32 %v192, %v207
  %v209 = vsel %vm193, %v194, %v208
  %v210 = vmax.f32 %v209, 0.0
  %vm211 = vcmp.ne.f32.partialorder %v209, %v209
  %v212 = vadd.f32 %v209, 0.0
  %v213 = vand.u32 2147483647, %v209
  %v214 = vsub.f32 0.0, %v213
  %v215 = vmul.f32 %v214, 1.442695
  %v216 = vpow.pop %v215
  %v217 = vadd.f32 %v216, 1.0
  %v218 = vlog2.pop %v217
  %v219 = vmul.f32 %v218, 0.6931472
  %v220 = vmul.f32 -0.5, %v216
  %v221 = vadd.f32 %v220, 1.0
  %v222 = vmul.f32 %v221, %v216
  %v223 = vand.u32 2147483647, %v216
  %vm224 = vcmp.lt.f32.partialorder %v223, 0.0004427343
  %v225 = vsel %vm224, %v222, %v219
  %v226 = vadd.f32 %v210, %v225
  %v227 = vsel %vm211, %v212, %v226
  %v228 = vlaneseq
  %v229 = vand.u32 %v228, 127
  %vm230 = vcmp.ge.s32.totalorder %v229, 8
  %v231 = vsel %vm230, %v227, %v189
  %232 = vst.msk [vmem:[%s5] sm:$0xff] %vm30, %v231
  // Predicated region
  $region22: #{mlp_for_two.1} parent=0 // pred_check
    _
  $region23: #{mlp_for_two.1} parent=0 // pred_check_branch
    %234 = sbr.rel (0) target = $region25
  $region24: #{mlp_for_two.1} parent=0 // pred_region
    _
  $region25: #{mlp_for_two.1} parent=0 // pred_fallthru
    _
  // Predicated region
  $region26: #{mlp_for_two.1} parent=0 // pred_check
    _
  $region27: #{mlp_for_two.1} parent=0 // pred_check_branch
    %236 = sbr.rel (0) target = $region29
  $region28: #{mlp_for_two.1} parent=0 // pred_region
    _
  $region29: #{mlp_for_two.1} parent=0 // pred_fallthru
    _

</llo_original>
